<compile_context>
chip_gen: v7x
topology: tpu7x:2x2x1
jax: 0.10.0
libtpu: 0.0.40
codegen_flags: <defaults>
</compile_context>

<pallas_src>
import math

import jax
import jax.numpy as jnp
import numpy as np
from jax.experimental import pallas as pl
from jax.experimental.pallas import tpu as pltpu

PACK = 8  # logical rows packed per sublane row (8 rows * 16 feats = 128 lanes)


# ----------------------------------------------------------------------------
# te_matrix prior (from the PyTorch source)
# ----------------------------------------------------------------------------
def te_matrix():
    return np.array(
        [[-1, 0, 1, -1, 1, 0, -1, -1, -1, -1, -1, -1, -1, -1, -1, -1],
         [-1, 0, 1, -1, 1, 1, -1, -1, -1, -1, -1, -1, -1, -1, -1, -1],
         [-1, 0, 1, -1, 1, 0, -1, -1, -1, -1, -1, -1, -1, -1, -1, -1],
         [-1, 0, 0, -1, 0, 1, 1, 0, 0, 1, 0, -1, 0, 0, 0, 0],
         [-1, 0, 1, -1, 1, -1, -1, -1, -1, -1, -1, -1, -1, -1, -1, -1]],
        dtype=np.float32)


def _round_up(x, m):
    return (x + m - 1) // m * m


def _bdiag(W):
    """(din, dout) -> (PACK*din, PACK*dout) block-diagonal (PACK copies of W)."""
    return jnp.kron(jnp.eye(PACK, dtype=W.dtype), W)


def _tile_row(b):
    """(1, d) bias -> (1, PACK*d) packed-lane bias (one copy per packed row)."""
    return jnp.tile(b, (1, PACK))


# ----------------------------------------------------------------------------
# Pallas kernel: fused forward for one tile of packed rows
# ----------------------------------------------------------------------------
def _att_ief_kernel(x_ref, c_ref, wx_ref, wc_ref, wf_ref, ones_ref, b_ref, o_ref):
    f32 = jnp.float32
    PD = ones_ref.shape[0]     # PACK * dim_stochastic  (packed lane width)
    PDO = o_ref.shape[1]       # PACK * dim_output

    x = x_ref[...]             # (TR, PACK*DI)
    c = c_ref[...]             # (TR, PACK*DT)
    b = b_ref[...]             # (8, LB) — one bias per sublane row
    bi, bqk = b[0:1, :PD], b[1:2, :PD]
    bctl, bte1, bte2, blck = b[2:3, :PD], b[3:4, :PD], b[4:5, :PD], b[5:6, :PD]
    bfold = b[6:7, :PDO]

    # [inp | qk] in one full-lane MXU pass (inp_layer and Wq@Wk.T folded offline).
    xo = jnp.dot(x, wx_ref[...], preferred_element_type=f32)        # (TR, 2*PD)
    inp = xo[:, :PD] + bi
    qk = xo[:, PD:2 * PD] + bqk

    # Four treatment gate pre-activations in one full-lane MXU pass.
    co = jnp.dot(c, wc_ref[...], preferred_element_type=f32)        # (TR, 4*PD)
    ctl = jnp.tanh(co[:, :PD] + bctl)
    a1 = jax.nn.sigmoid(co[:, PD:2 * PD] + bte1)
    g2 = jax.nn.sigmoid(-(co[:, 2 * PD:3 * PD] + bte2))   # exp(-softplus(z)) == sigmoid(-z)
    b1 = jax.nn.sigmoid(co[:, 3 * PD:4 * PD] + blck)

    out_lin = inp * ctl                                    # control path
    out_te = inp * a1 * g2                                 # TreatmentExponential (eps=0)
    out_lck = inp * (1.0 - b1 * jnp.log1p(jnp.abs(inp)))   # LogCellKill

    # Attention scores: per-logical-row segmented dot + broadcast via a
    # block-diagonal ones matrix (1/sqrt(D) scale folded in offline).
    ones = ones_ref[...]
    s0 = jnp.dot(qk * out_lin, ones, preferred_element_type=f32)
    s1 = jnp.dot(qk * out_te, ones, preferred_element_type=f32)
    s2 = jnp.dot(qk * out_lck, ones, preferred_element_type=f32)

    m = jnp.maximum(jnp.maximum(s0, s1), s2)
    e0 = jnp.exp(s0 - m)
    e1 = jnp.exp(s1 - m)
    e2 = jnp.exp(s2 - m)
    inv = 1.0 / (e0 + e1 + e2)     # exact: keeps sum(p)==1 so the V/bv fold is exact
    mix = (e0 * out_lin + e1 * out_te + e2 * out_lck) * inv

    # out = inp @ Wout + mix @ (Wv@Wo@Wout) + bfold   (Zmat identity elided)
    res = (jnp.dot(inp, wf_ref[:, :PDO], preferred_element_type=f32)
           + jnp.dot(mix, wf_ref[:, PDO:2 * PDO], preferred_element_type=f32)
           + bfold)
    o_ref[...] = res.astype(o_ref.dtype)      # lane-dense (TR, PACK*DO) store


# ----------------------------------------------------------------------------
# Wrapper: offline folds, block-diag weight packing, row tiling, launch
# ----------------------------------------------------------------------------
def attention_ief_forward(inpx, con, params, tile_n=1024):
    B, T, DI = inpx.shape
    DT = con.shape[-1]
    D = params["Wi"].shape[1]
    DO = params["Wout"].shape[1]
    for d in (D, DI, DT, DO):
        assert d % 16 == 0, "8-row lane packing needs feature dims that are multiples of 16"
    N = B * T
    f32 = jnp.float32

    # ---------------- offline algebraic folds (pure weight math) -------------
    Wi, bi = params["Wi"].astype(f32), params["bi"].astype(f32)
    Wqk = params["Wq"] @ params["Wk"].T                    # K folded into Q
    bqk = params["bq"] @ params["Wk"].T                    # (q·bk cancels in softmax)
    WvoW = params["Wv"] @ params["Wo"] @ params["Wout"]    # V/Wo/Wout folded thru softmax
    bfold = (params["bv"] @ params["Wo"] @ params["Wout"]
             + params["bo"] @ params["Wout"] + params["bout"])

    # ---------------- block-diagonal (lane-packed) weight slabs --------------
    wx_slab = jnp.concatenate([_bdiag(Wi), _bdiag(Wi @ Wqk)], axis=1).astype(f32)
    wc_slab = jnp.concatenate(
        [_bdiag(params["Wc"]), _bdiag(params["Wte1"]),
         _bdiag(params["Wte2"]), _bdiag(params["Wlck"])], axis=1).astype(f32)
    wf_slab = jnp.concatenate([_bdiag(params["Wout"]), _bdiag(WvoW)], axis=1).astype(f32)
    seg_ones = (jnp.kron(jnp.eye(PACK, dtype=f32), jnp.ones((D, D), f32))
                * (1.0 / math.sqrt(D)))

    LB = max(PACK * D, PACK * DO)

    def row(v):
        v = _tile_row(v.astype(f32))
        return jnp.pad(v, ((0, 0), (0, LB - v.shape[1])))

    b_slab = jnp.concatenate(
        [row(bi), row(bi @ Wqk + bqk), row(params["bc"]), row(params["bte1"]),
         row(params["bte2"]), row(params["blck"]), row(bfold),
         jnp.zeros((1, LB), f32)], axis=0)                  # (8, LB), sublane-indexed

    # ---------------- row tiling (rows are a multiple of 64 -> 8 packed rows)
    x2 = inpx.reshape(N, DI).astype(f32)
    c2 = con.reshape(N, DT).astype(f32)
    tile_n = max(64, _round_up(tile_n, 64))
    tile_n = min(tile_n, _round_up(N, 64))
    half = _round_up(-(-N // 2), 64)
    if _round_up(N, 64) >= 128 and tile_n > half:
        tile_n = half            # v7x: keep >=2 grid steps so both TCs get work
    Np = _round_up(N, tile_n)
    if Np != N:                  # padded rows compute on zeros; results discarded
        x2 = jnp.pad(x2, ((0, Np - N), (0, 0)))
        c2 = jnp.pad(c2, ((0, Np - N), (0, 0)))
    xp = x2.reshape(Np // PACK, PACK * DI)      # free row-major repack
    cp = c2.reshape(Np // PACK, PACK * DT)
    tr = tile_n // PACK
    grid = (Np // tile_n,)

    in_specs = [
        pl.BlockSpec((tr, PACK * DI), lambda i: (i, 0)),
        pl.BlockSpec((tr, PACK * DT), lambda i: (i, 0)),
        pl.BlockSpec(wx_slab.shape, lambda i: (0, 0)),
        pl.BlockSpec(wc_slab.shape, lambda i: (0, 0)),
        pl.BlockSpec(wf_slab.shape, lambda i: (0, 0)),
        pl.BlockSpec(seg_ones.shape, lambda i: (0, 0)),
        pl.BlockSpec(b_slab.shape, lambda i: (0, 0)),
    ]

    out = pl.pallas_call(
        _att_ief_kernel,
        out_shape=jax.ShapeDtypeStruct((Np // PACK, PACK * DO), f32),
        grid=grid,
        in_specs=in_specs,
        out_specs=pl.BlockSpec((tr, PACK * DO), lambda i: (i, 0)),
        compiler_params=pltpu.CompilerParams(
            dimension_semantics=("parallel",),
            vmem_limit_bytes=32 * 1024 * 1024),
    )(xp, cp, wx_slab, wc_slab, wf_slab, seg_ones, b_slab)

    return out.reshape(Np, DO)[:N].reshape(B, T, DO)


# ----------------------------------------------------------------------------
# Deterministic parameter construction (mirrors __init__ shapes)
# ----------------------------------------------------------------------------
def _linear(key, fan_in, fan_out):
    """PyTorch nn.Linear default init; returned pre-transposed: W (in,out), b (1,out)."""
    kw, kb = jax.random.split(key)
    bound = 1.0 / math.sqrt(fan_in)
    W = jax.random.uniform(kw, (fan_out, fan_in), jnp.float32, -bound, bound)
    b = jax.random.uniform(kb, (1, fan_out), jnp.float32, -bound, bound)
    return W.T, b


def make_params(key, dim_stochastic, dim_treat, dim_input, dim_output):
    D = dim_stochastic
    ks = jax.random.split(key, 16)
    P = {}
    P["Wi"], P["bi"] = _linear(ks[0], dim_input, D)            # inp_layer
    Wc_t, P["bc"] = _linear(ks[1], dim_treat, D)               # control_layer
    # prior on control_layer.weight[:, -8:-3]  (use_te=False branch)
    rand_w = jax.random.normal(ks[2], (16, D), jnp.float32) * 0.1
    pw = jnp.asarray(te_matrix()) @ rand_w                     # (5, D)
    Wc = Wc_t.T                                                # back to (D, dim_treat)
    Wc = Wc.at[:, dim_treat - 8:dim_treat - 3].set(pw.T)
    P["Wc"] = Wc.T
    P["Wte1"], P["bte1"] = _linear(ks[3], dim_treat, D)        # treatment_exp alpha_1
    P["Wte2"], P["bte2"] = _linear(ks[4], dim_treat, D)        # treatment_exp alpha_2
    P["Wlck"], P["blck"] = _linear(ks[5], dim_treat, D)        # logcell alpha_1
    P["Wq"], P["bq"] = _linear(ks[6], D, D)                    # attn.linears[0]
    P["Wk"], P["bk"] = _linear(ks[7], D, D)                    # attn.linears[1]
    P["Wv"], P["bv"] = _linear(ks[8], D, D)                    # attn.linears[2]
    P["Wo"], P["bo"] = _linear(ks[9], D, D)                    # attn.linears[3]
    P["Zmat"] = jnp.eye(D, dtype=jnp.float32)                  # zmatrix='identity'
    P["Wout"], P["bout"] = _linear(ks[10], D, dim_output)      # out_layer (otype='linear')
    return P


# ----------------------------------------------------------------------------
# Pure-JAX reference (un-fused math) for a sanity check
# ----------------------------------------------------------------------------
def reference_forward(inpx, con, P, eps=0.0):
    lin = lambda x, W, b: x @ W + b
    inp = lin(inpx, P["Wi"], P["bi"])
    out_linear = inp * jnp.tanh(lin(con, P["Wc"], P["bc"]))
    out_te = (inp + eps) * jax.nn.sigmoid(lin(con, P["Wte1"], P["bte1"])) * \
        jnp.exp(-jax.nn.softplus(lin(con, P["Wte2"], P["bte2"])))
    out_lck = inp * (1.0 - jax.nn.sigmoid(lin(con, P["Wlck"], P["blck"]))
                     * jnp.log1p(jnp.abs(inp)))
    q = lin(inp, P["Wq"], P["bq"])
    cands = [out_linear, out_te, out_lck]
    ks = [lin(x, P["Wk"], P["bk"]) for x in cands]
    vs = [lin(x, P["Wv"], P["bv"]) for x in cands]
    scale = 1.0 / math.sqrt(q.shape[-1])
    s = jnp.stack([jnp.sum(q * k, -1) for k in ks], -1) * scale
    p = jax.nn.softmax(s, axis=-1)
    att = sum(p[..., j:j + 1] * vs[j] for j in range(3))
    att = lin(att, P["Wo"], P["bo"])
    return lin(inp @ P["Zmat"] + att, P["Wout"], P["bout"])


# ----------------------------------------------------------------------------
if __name__ == "__main__":
    B, T = 2, 8
    dim_stochastic = 16
    dim_treat = 16
    dim_input = dim_stochastic    # dim_input == -1 default
    dim_output = dim_stochastic   # dim_output == -1 default

    key = jax.random.PRNGKey(0)
    k_params, k_x, k_c = jax.random.split(key, 3)
    params = make_params(k_params, dim_stochastic, dim_treat, dim_input, dim_output)

    inpx = jax.random.normal(k_x, (B, T, dim_input), jnp.float32)
    con = jax.random.normal(k_c, (B, T, dim_treat), jnp.float32)

    out = attention_ief_forward(inpx, con, params)
    out = jax.block_until_ready(out)
    ref = reference_forward(inpx, con, params)
    assert out.shape == (B, T, dim_output)
    np.testing.assert_allclose(np.asarray(out), np.asarray(ref), atol=2e-3, rtol=2e-3)

    # second case exercising the multi-tile (grid > 1) path
    B2, T2 = 3, 40
    inpx2 = jax.random.normal(jax.random.PRNGKey(1), (B2, T2, dim_input), jnp.float32)
    con2 = jax.random.normal(jax.random.PRNGKey(2), (B2, T2, dim_treat), jnp.float32)
    out2 = jax.block_until_ready(attention_ief_forward(inpx2, con2, params))
    ref2 = reference_forward(inpx2, con2, params)
    np.testing.assert_allclose(np.asarray(out2), np.asarray(ref2), atol=2e-3, rtol=2e-3)

    print("KERNEL_OK")
</pallas_src>

<mosaic_0001>
module attributes {stable_mosaic.version = 11 : i64} {
  func.func @_att_ief_kernel(%arg0: i32, %arg1: memref<8x128xf32, #tpu.memory_space<vmem>>, %arg2: memref<8x128xf32, #tpu.memory_space<vmem>>, %arg3: memref<128x256xf32, #tpu.memory_space<vmem>>, %arg4: memref<128x512xf32, #tpu.memory_space<vmem>>, %arg5: memref<128x256xf32, #tpu.memory_space<vmem>>, %arg6: memref<128x128xf32, #tpu.memory_space<vmem>>, %arg7: memref<8x128xf32, #tpu.memory_space<vmem>>, %arg8: memref<8x128xf32, #tpu.memory_space<vmem>>) attributes {dimension_semantics = [#tpu.dimension_semantics<parallel>], iteration_bounds = array<i64: 1>, scalar_prefetch = 0 : i64, scratch_operands = 0 : i64, tpu.core_type = #tpu.core_type<tc>, window_params = [{transform_indices = @transform_0, window_bounds = array<i64: 8, 128>}, {transform_indices = @transform_1, window_bounds = array<i64: 8, 128>}, {pipeline_mode = #tpu.pipeline_mode<synchronous>, transform_indices = @transform_2, window_bounds = array<i64: 128, 256>}, {pipeline_mode = #tpu.pipeline_mode<synchronous>, transform_indices = @transform_3, window_bounds = array<i64: 128, 512>}, {pipeline_mode = #tpu.pipeline_mode<synchronous>, transform_indices = @transform_4, window_bounds = array<i64: 128, 256>}, {pipeline_mode = #tpu.pipeline_mode<synchronous>, transform_indices = @transform_5, window_bounds = array<i64: 128, 128>}, {pipeline_mode = #tpu.pipeline_mode<synchronous>, transform_indices = @transform_6, window_bounds = array<i64: 8, 128>}, {transform_indices = @transform_7, window_bounds = array<i64: 8, 128>}]} {
    %c0 = arith.constant 0 : index
    %c0_0 = arith.constant 0 : index
    %0 = vector.load %arg1[%c0, %c0_0] : memref<8x128xf32, #tpu.memory_space<vmem>>, vector<8x128xf32>
    %c0_1 = arith.constant 0 : index
    %c0_2 = arith.constant 0 : index
    %1 = vector.load %arg2[%c0_1, %c0_2] : memref<8x128xf32, #tpu.memory_space<vmem>>, vector<8x128xf32>
    %c0_3 = arith.constant 0 : index
    %c0_4 = arith.constant 0 : index
    %2 = vector.load %arg7[%c0_3, %c0_4] : memref<8x128xf32, #tpu.memory_space<vmem>>, vector<8x128xf32>
    %3 = vector.extract_strided_slice %2 {offsets = [0, 0], sizes = [1, 128], strides = [1, 1]} : vector<8x128xf32> to vector<1x128xf32>
    %4 = vector.extract_strided_slice %2 {offsets = [1, 0], sizes = [1, 128], strides = [1, 1]} : vector<8x128xf32> to vector<1x128xf32>
    %5 = vector.extract_strided_slice %2 {offsets = [2, 0], sizes = [1, 128], strides = [1, 1]} : vector<8x128xf32> to vector<1x128xf32>
    %6 = vector.extract_strided_slice %2 {offsets = [3, 0], sizes = [1, 128], strides = [1, 1]} : vector<8x128xf32> to vector<1x128xf32>
    %7 = vector.extract_strided_slice %2 {offsets = [4, 0], sizes = [1, 128], strides = [1, 1]} : vector<8x128xf32> to vector<1x128xf32>
    %8 = vector.extract_strided_slice %2 {offsets = [5, 0], sizes = [1, 128], strides = [1, 1]} : vector<8x128xf32> to vector<1x128xf32>
    %9 = vector.extract_strided_slice %2 {offsets = [6, 0], sizes = [1, 128], strides = [1, 1]} : vector<8x128xf32> to vector<1x128xf32>
    %c0_5 = arith.constant 0 : index
    %c0_6 = arith.constant 0 : index
    %10 = vector.load %arg3[%c0_5, %c0_6] : memref<128x256xf32, #tpu.memory_space<vmem>>, vector<128x256xf32>
    %cst = arith.constant dense<0.000000e+00> : vector<8x256xf32>
    %11 = tpu.matmul %0, %10, %cst {dimension_numbers = #tpu.dot_dimension_numbers<[1], [0], [0], [1], [0, 0, 1, 1], [], []>} : vector<8x128xf32>, vector<128x256xf32>, vector<8x256xf32> -> vector<8x256xf32>
    %12 = vector.extract_strided_slice %11 {offsets = [0, 0], sizes = [8, 128], strides = [1, 1]} : vector<8x256xf32> to vector<8x128xf32>
    %13 = vector.broadcast %3 : vector<1x128xf32> to vector<8x128xf32>
    %14 = arith.addf %12, %13 : vector<8x128xf32>
    %15 = vector.extract_strided_slice %11 {offsets = [0, 128], sizes = [8, 128], strides = [1, 1]} : vector<8x256xf32> to vector<8x128xf32>
    %16 = vector.broadcast %4 : vector<1x128xf32> to vector<8x128xf32>
    %17 = arith.addf %15, %16 : vector<8x128xf32>
    %c0_7 = arith.constant 0 : index
    %c0_8 = arith.constant 0 : index
    %18 = vector.load %arg4[%c0_7, %c0_8] : memref<128x512xf32, #tpu.memory_space<vmem>>, vector<128x512xf32>
    %cst_9 = arith.constant dense<0.000000e+00> : vector<8x512xf32>
    %19 = tpu.matmul %1, %18, %cst_9 {dimension_numbers = #tpu.dot_dimension_numbers<[1], [0], [0], [1], [0, 0, 1, 1], [], []>} : vector<8x128xf32>, vector<128x512xf32>, vector<8x512xf32> -> vector<8x512xf32>
    %20 = vector.extract_strided_slice %19 {offsets = [0, 0], sizes = [8, 128], strides = [1, 1]} : vector<8x512xf32> to vector<8x128xf32>
    %21 = vector.broadcast %5 : vector<1x128xf32> to vector<8x128xf32>
    %22 = arith.addf %20, %21 : vector<8x128xf32>
    %23 = math.tanh %22 : vector<8x128xf32>
    %24 = vector.extract_strided_slice %19 {offsets = [0, 128], sizes = [8, 128], strides = [1, 1]} : vector<8x512xf32> to vector<8x128xf32>
    %25 = vector.broadcast %6 : vector<1x128xf32> to vector<8x128xf32>
    %26 = arith.addf %24, %25 : vector<8x128xf32>
    %27 = arith.negf %26 : vector<8x128xf32>
    %28 = math.exp %27 : vector<8x128xf32>
    %cst_10 = arith.constant 1.000000e+00 : f32
    %29 = vector.broadcast %cst_10 : f32 to vector<8x128xf32>
    %30 = arith.addf %29, %28 : vector<8x128xf32>
    %31 = arith.divf %29, %30 : vector<8x128xf32>
    %32 = vector.extract_strided_slice %19 {offsets = [0, 256], sizes = [8, 128], strides = [1, 1]} : vector<8x512xf32> to vector<8x128xf32>
    %33 = vector.broadcast %7 : vector<1x128xf32> to vector<8x128xf32>
    %34 = arith.addf %32, %33 : vector<8x128xf32>
    %cst_11 = arith.constant 0.000000e+00 : f32
    %35 = vector.broadcast %cst_11 : f32 to vector<8x128xf32>
    %36 = arith.subf %35, %34 : vector<8x128xf32>
    %37 = arith.negf %36 : vector<8x128xf32>
    %38 = math.exp %37 : vector<8x128xf32>
    %cst_12 = arith.constant 1.000000e+00 : f32
    %39 = vector.broadcast %cst_12 : f32 to vector<8x128xf32>
    %40 = arith.addf %39, %38 : vector<8x128xf32>
    %41 = arith.divf %39, %40 : vector<8x128xf32>
    %42 = vector.extract_strided_slice %19 {offsets = [0, 384], sizes = [8, 128], strides = [1, 1]} : vector<8x512xf32> to vector<8x128xf32>
    %43 = vector.broadcast %8 : vector<1x128xf32> to vector<8x128xf32>
    %44 = arith.addf %42, %43 : vector<8x128xf32>
    %45 = arith.negf %44 : vector<8x128xf32>
    %46 = math.exp %45 : vector<8x128xf32>
    %cst_13 = arith.constant 1.000000e+00 : f32
    %47 = vector.broadcast %cst_13 : f32 to vector<8x128xf32>
    %48 = arith.addf %47, %46 : vector<8x128xf32>
    %49 = arith.divf %47, %48 : vector<8x128xf32>
    %50 = arith.mulf %14, %23 : vector<8x128xf32>
    %51 = arith.mulf %14, %31 : vector<8x128xf32>
    %52 = arith.mulf %51, %41 : vector<8x128xf32>
    %53 = math.absf %14 : vector<8x128xf32>
    %54 = math.log1p %53 : vector<8x128xf32>
    %55 = arith.mulf %49, %54 : vector<8x128xf32>
    %cst_14 = arith.constant 1.000000e+00 : f32
    %56 = vector.broadcast %cst_14 : f32 to vector<8x128xf32>
    %57 = arith.subf %56, %55 : vector<8x128xf32>
    %58 = arith.mulf %14, %57 : vector<8x128xf32>
    %c0_15 = arith.constant 0 : index
    %c0_16 = arith.constant 0 : index
    %59 = vector.load %arg6[%c0_15, %c0_16] : memref<128x128xf32, #tpu.memory_space<vmem>>, vector<128x128xf32>
    %60 = arith.mulf %17, %50 : vector<8x128xf32>
    %cst_17 = arith.constant dense<0.000000e+00> : vector<8x128xf32>
    %61 = tpu.matmul %60, %59, %cst_17 {dimension_numbers = #tpu.dot_dimension_numbers<[1], [0], [0], [1], [0, 0, 1, 1], [], []>} : vector<8x128xf32>, vector<128x128xf32>, vector<8x128xf32> -> vector<8x128xf32>
    %62 = arith.mulf %17, %52 : vector<8x128xf32>
    %cst_18 = arith.constant dense<0.000000e+00> : vector<8x128xf32>
    %63 = tpu.matmul %62, %59, %cst_18 {dimension_numbers = #tpu.dot_dimension_numbers<[1], [0], [0], [1], [0, 0, 1, 1], [], []>} : vector<8x128xf32>, vector<128x128xf32>, vector<8x128xf32> -> vector<8x128xf32>
    %64 = arith.mulf %17, %58 : vector<8x128xf32>
    %cst_19 = arith.constant dense<0.000000e+00> : vector<8x128xf32>
    %65 = tpu.matmul %64, %59, %cst_19 {dimension_numbers = #tpu.dot_dimension_numbers<[1], [0], [0], [1], [0, 0, 1, 1], [], []>} : vector<8x128xf32>, vector<128x128xf32>, vector<8x128xf32> -> vector<8x128xf32>
    %66 = arith.maximumf %61, %63 : vector<8x128xf32>
    %67 = arith.maximumf %66, %65 : vector<8x128xf32>
    %68 = arith.subf %61, %67 : vector<8x128xf32>
    %69 = math.exp %68 : vector<8x128xf32>
    %70 = arith.subf %63, %67 : vector<8x128xf32>
    %71 = math.exp %70 : vector<8x128xf32>
    %72 = arith.subf %65, %67 : vector<8x128xf32>
    %73 = math.exp %72 : vector<8x128xf32>
    %74 = arith.addf %69, %71 : vector<8x128xf32>
    %75 = arith.addf %74, %73 : vector<8x128xf32>
    %cst_20 = arith.constant 1.000000e+00 : f32
    %76 = vector.broadcast %cst_20 : f32 to vector<8x128xf32>
    %77 = arith.divf %76, %75 : vector<8x128xf32>
    %78 = arith.mulf %69, %50 : vector<8x128xf32>
    %79 = arith.mulf %71, %52 : vector<8x128xf32>
    %80 = arith.addf %78, %79 : vector<8x128xf32>
    %81 = arith.mulf %73, %58 : vector<8x128xf32>
    %82 = arith.addf %80, %81 : vector<8x128xf32>
    %83 = arith.mulf %82, %77 : vector<8x128xf32>
    %c0_21 = arith.constant 0 : index
    %c0_22 = arith.constant 0 : index
    %84 = vector.load %arg5[%c0_21, %c0_22] : memref<128x256xf32, #tpu.memory_space<vmem>>, vector<128x128xf32>
    %cst_23 = arith.constant dense<0.000000e+00> : vector<8x128xf32>
    %85 = tpu.matmul %14, %84, %cst_23 {dimension_numbers = #tpu.dot_dimension_numbers<[1], [0], [0], [1], [0, 0, 1, 1], [], []>} : vector<8x128xf32>, vector<128x128xf32>, vector<8x128xf32> -> vector<8x128xf32>
    %c0_24 = arith.constant 0 : index
    %c128 = arith.constant 128 : index
    %86 = vector.load %arg5[%c0_24, %c128] : memref<128x256xf32, #tpu.memory_space<vmem>>, vector<128x128xf32>
    %cst_25 = arith.constant dense<0.000000e+00> : vector<8x128xf32>
    %87 = tpu.matmul %83, %86, %cst_25 {dimension_numbers = #tpu.dot_dimension_numbers<[1], [0], [0], [1], [0, 0, 1, 1], [], []>} : vector<8x128xf32>, vector<128x128xf32>, vector<8x128xf32> -> vector<8x128xf32>
    %88 = arith.addf %85, %87 : vector<8x128xf32>
    %89 = vector.broadcast %9 : vector<1x128xf32> to vector<8x128xf32>
    %90 = arith.addf %88, %89 : vector<8x128xf32>
    %c0_26 = arith.constant 0 : index
    %c0_27 = arith.constant 0 : index
    %91 = vector.load %arg8[%c0_26, %c0_27] : memref<8x128xf32, #tpu.memory_space<vmem>>, vector<8x128xf32>
    tpu.vector_store %arg8[%c0_26, %c0_27], %90 {strides = array<i32>} : memref<8x128xf32, #tpu.memory_space<vmem>>, vector<8x128xf32>,
    return
  }
  func.func @transform_0(%arg0: i32) -> (i32, i32) {
    %c0_i32 = arith.constant 0 : i32
    %c0_i32_0 = arith.constant 0 : i32
    return %arg0, %c0_i32 : i32, i32
  }
  func.func @transform_1(%arg0: i32) -> (i32, i32) {
    %c0_i32 = arith.constant 0 : i32
    %c0_i32_0 = arith.constant 0 : i32
    return %arg0, %c0_i32 : i32, i32
  }
  func.func @transform_2(%arg0: i32) -> (i32, i32) {
    %c0_i32 = arith.constant 0 : i32
    %c0_i32_0 = arith.constant 0 : i32
    %c0_i32_1 = arith.constant 0 : i32
    return %c0_i32, %c0_i32_0 : i32, i32
  }
  func.func @transform_3(%arg0: i32) -> (i32, i32) {
    %c0_i32 = arith.constant 0 : i32
    %c0_i32_0 = arith.constant 0 : i32
    %c0_i32_1 = arith.constant 0 : i32
    return %c0_i32, %c0_i32_0 : i32, i32
  }
  func.func @transform_4(%arg0: i32) -> (i32, i32) {
    %c0_i32 = arith.constant 0 : i32
    %c0_i32_0 = arith.constant 0 : i32
    %c0_i32_1 = arith.constant 0 : i32
    return %c0_i32, %c0_i32_0 : i32, i32
  }
  func.func @transform_5(%arg0: i32) -> (i32, i32) {
    %c0_i32 = arith.constant 0 : i32
    %c0_i32_0 = arith.constant 0 : i32
    %c0_i32_1 = arith.constant 0 : i32
    return %c0_i32, %c0_i32_0 : i32, i32
  }
  func.func @transform_6(%arg0: i32) -> (i32, i32) {
    %c0_i32 = arith.constant 0 : i32
    %c0_i32_0 = arith.constant 0 : i32
    %c0_i32_1 = arith.constant 0 : i32
    return %c0_i32, %c0_i32_0 : i32, i32
  }
  func.func @transform_7(%arg0: i32) -> (i32, i32) {
    %c0_i32 = arith.constant 0 : i32
    %c0_i32_0 = arith.constant 0 : i32
    return %arg0, %c0_i32 : i32, i32
  }
}

</mosaic_0001>

<llo_original>
// kernel: tpu_custom_call.1
$region0: #{tpu_custom_call.1}
  #allocation0 [shape = 'u32[]', space=smem, size = 0x4, offset = 0x4, fixed_abs, tag = 'smem constant byte address 0x4 - core index']
  #allocation1 [shape = 'u32[144,128]{1,0:T(1,128)}', space=vmem, size = 0x12000, scoped, tag = 'internal scratch']
  %s0 = inlined_call_operand.hbm [shape: f32[8,128], index: 0, kind: input, shape index: {}]
  %s1 = inlined_call_operand.hbm [shape: f32[8,128], index: 1, kind: input, shape index: {}]
  %s2 = inlined_call_operand.hbm [shape: f32[128,256], index: 2, kind: input, shape index: {}]
  %s3 = inlined_call_operand.hbm [shape: f32[128,512], index: 3, kind: input, shape index: {}]
  %s4 = inlined_call_operand.hbm [shape: f32[128,256], index: 4, kind: input, shape index: {}]
  %s5 = inlined_call_operand.hbm [shape: f32[128,128], index: 5, kind: input, shape index: {}]
  %s6 = inlined_call_operand.vmem [shape: f32[8,128], index: 6, kind: input, shape index: {}]
  %s7 = inlined_call_operand.hbm [shape: f32[8,128], index: 7, kind: output, shape index: {}]
  %s8 = sld [smem:[#allocation0]]
  $region62: #{tpu_custom_call.1} parent=0
    _
  %s10 = ssub.s32 1, %s8
  %s11 = scalar_select 0, %s10, %s8
  $region1: #{tpu_custom_call.1} parent=0
    #allocation2 [shape = 'u8[4096]{0}', space=vmem, size = 0x1000, scoped, tag = 'input window, operand 0, single buffered']
    #allocation3 [shape = 's32[1]{0}', space=sflag, size = 0x4, scoped, tag = 'scoped memory for tpu_custom_call.1']
    #allocation4 [shape = 's32[1]{0}', space=sflag, size = 0x4, scoped, tag = 'scoped memory for tpu_custom_call.1']
    #allocation5 [shape = 'u8[4096]{0}', space=vmem, size = 0x1000, scoped, tag = 'input window, operand 1, single buffered']
    #allocation6 [shape = 's32[1]{0}', space=sflag, size = 0x4, scoped, tag = 'scoped memory for tpu_custom_call.1']
    #allocation7 [shape = 'u8[131072]{0}', space=vmem, size = 0x20000, scoped, tag = 'input window, operand 2, single buffered']
    #allocation8 [shape = 'u8[262144]{0}', space=vmem, size = 0x40000, scoped, tag = 'input window, operand 3, single buffered']
    #allocation9 [shape = 's32[1]{0}', space=sflag, size = 0x4, scoped, tag = 'scoped memory for tpu_custom_call.1']
    #allocation10 [shape = 'u8[131072]{0}', space=vmem, size = 0x20000, scoped, tag = 'input window, operand 4, single buffered']
    #allocation11 [shape = 'u8[65536]{0}', space=vmem, size = 0x10000, scoped, tag = 'input window, operand 5, single buffered']
    #allocation12 [shape = 's32[1]{0}', space=sflag, size = 0x4, scoped, tag = 'scoped memory for tpu_custom_call.1']
    #allocation13 [shape = 'u8[4096]{0}', space=vmem, size = 0x1000, scoped, tag = 'output window, operand 0, single buffered']
    %12 = vsyncpa [#allocation3], 0
    %13 = vsyncpa [#allocation6], 0
    %14 = vsyncpa [#allocation9], 0
    %15 = vsyncpa [#allocation12], 0
    %16 = vsyncpa [#allocation4], 0
    // Predicated region
    $region2: #{tpu_custom_call.1} parent=1 // pred_check
      _
    $region3: #{tpu_custom_call.1} parent=1 // pred_check_branch
      %18 = sbr.rel (0) target = $region5
    $region4: #{tpu_custom_call.1} parent=1 // pred_region
      %s20 = ssub.s32 128, 128
      %21 = vsyncadd [#allocation3], %s20
      %s23 = sshll.u32 [#allocation2], 4
      %s24 = int_to_ptr.vmem [resolvable:$true] %s23
      %26 = dma.hbm_to_vmem [thread:$0]  %s0, 128, %s24, [#allocation3]
    $region5: #{tpu_custom_call.1} parent=1 // pred_fallthru
      _
    // Predicated region
    $region6: #{tpu_custom_call.1} parent=1 // pred_check
      _
    $region7: #{tpu_custom_call.1} parent=1 // pred_check_branch
      %28 = sbr.rel (0) target = $region9
    $region8: #{tpu_custom_call.1} parent=1 // pred_region
      %s30 = ssub.s32 128, 128
      %31 = vsyncadd [#allocation6], %s30
      %s33 = sshll.u32 [#allocation5], 4
      %s34 = int_to_ptr.vmem [resolvable:$true] %s33
      %36 = dma.hbm_to_vmem [thread:$0]  %s1, 128, %s34, [#allocation6]
    $region9: #{tpu_custom_call.1} parent=1 // pred_fallthru
      _
    // Predicated region
    $region10: #{tpu_custom_call.1} parent=1 // pred_check
      _
    $region11: #{tpu_custom_call.1} parent=1 // pred_check_branch
      %38 = sbr.rel (0) target = $region13
    $region12: #{tpu_custom_call.1} parent=1 // pred_region
      %s40 = ssub.s32 4096, 4096
      %41 = vsyncadd [#allocation6], %s40
      %s42 = sshll.u32 [#allocation7], 4
      %s43 = int_to_ptr.vmem [resolvable:$true] %s42
      %48 = dma.hbm_to_vmem [thread:$0]  %s2, 4096, %s43, [#allocation6], 256, 256, 16
    $region13: #{tpu_custom_call.1} parent=1 // pred_fallthru
      _
    // Predicated region
    $region14: #{tpu_custom_call.1} parent=1 // pred_check
      _
    $region15: #{tpu_custom_call.1} parent=1 // pred_check_branch
      %50 = sbr.rel (0) target = $region17
    $region16: #{tpu_custom_call.1} parent=1 // pred_region
      %s52 = ssub.s32 8192, 8192
      %53 = vsyncadd [#allocation9], %s52
      %s54 = sshll.u32 [#allocation8], 4
      %s55 = int_to_ptr.vmem [resolvable:$true] %s54
      %60 = dma.hbm_to_vmem [thread:$0]  %s3, 8192, %s55, [#allocation9], 512, 512, 32
    $region17: #{tpu_custom_call.1} parent=1 // pred_fallthru
      _
    // Predicated region
    $region18: #{tpu_custom_call.1} parent=1 // pred_check
      _
    $region19: #{tpu_custom_call.1} parent=1 // pred_check_branch
      %62 = sbr.rel (0) target = $region21
    $region20: #{tpu_custom_call.1} parent=1 // pred_region
      %s64 = ssub.s32 4096, 4096
      %65 = vsyncadd [#allocation9], %s64
      %s66 = sshll.u32 [#allocation10], 4
      %s67 = int_to_ptr.vmem [resolvable:$true] %s66
      %72 = dma.hbm_to_vmem [thread:$0]  %s4, 4096, %s67, [#allocation9], 256, 256, 16
    $region21: #{tpu_custom_call.1} parent=1 // pred_fallthru
      _
    // Predicated region
    $region22: #{tpu_custom_call.1} parent=1 // pred_check
      _
    $region23: #{tpu_custom_call.1} parent=1 // pred_check_branch
      %74 = sbr.rel (0) target = $region25
    $region24: #{tpu_custom_call.1} parent=1 // pred_region
      %s76 = ssub.s32 2048, 2048
      %77 = vsyncadd [#allocation12], %s76
      %s78 = sshll.u32 [#allocation11], 4
      %s79 = int_to_ptr.vmem [resolvable:$true] %s78
      %84 = dma.hbm_to_vmem [thread:$0]  %s5, 2048, %s79, [#allocation12], 128, 128, 8
    $region25: #{tpu_custom_call.1} parent=1 // pred_fallthru
      _
    // Predicated region
    $region26: #{tpu_custom_call.1} parent=1 // pred_check
      _
    $region27: #{tpu_custom_call.1} parent=1 // pred_check_branch
      %86 = sbr.rel (0) target = $region29
    $region28: #{tpu_custom_call.1} parent=1 // pred_region
      _
    $region29: #{tpu_custom_call.1} parent=1 // pred_fallthru
      _
    // Predicated region
    $region30: #{tpu_custom_call.1} parent=1 // pred_check
      _
    $region31: #{tpu_custom_call.1} parent=1 // pred_check_branch
      %88 = sbr.rel (0) target = $region33
    $region32: #{tpu_custom_call.1} parent=1 // pred_region
      %89 = dma.done [#allocation3], 128
    $region33: #{tpu_custom_call.1} parent=1 // pred_fallthru
      _
    // Predicated region
    $region34: #{tpu_custom_call.1} parent=1 // pred_check
      _
    $region35: #{tpu_custom_call.1} parent=1 // pred_check_branch
      %91 = sbr.rel (0) target = $region37
    $region36: #{tpu_custom_call.1} parent=1 // pred_region
      %92 = dma.done [#allocation6], 128
    $region37: #{tpu_custom_call.1} parent=1 // pred_fallthru
      _
    // Predicated region
    $region38: #{tpu_custom_call.1} parent=1 // pred_check
      _
    $region39: #{tpu_custom_call.1} parent=1 // pred_check_branch
      %94 = sbr.rel (0) target = $region41
    $region40: #{tpu_custom_call.1} parent=1 // pred_region
      %95 = dma.done [#allocation6], 4096
    $region41: #{tpu_custom_call.1} parent=1 // pred_fallthru
      _
    // Predicated region
    $region42: #{tpu_custom_call.1} parent=1 // pred_check
      _
    $region43: #{tpu_custom_call.1} parent=1 // pred_check_branch
      %97 = sbr.rel (0) target = $region45
    $region44: #{tpu_custom_call.1} parent=1 // pred_region
      %98 = dma.done [#allocation9], 8192
    $region45: #{tpu_custom_call.1} parent=1 // pred_fallthru
      _
    // Predicated region
    $region46: #{tpu_custom_call.1} parent=1 // pred_check
      _
    $region47: #{tpu_custom_call.1} parent=1 // pred_check_branch
      %100 = sbr.rel (0) target = $region49
    $region48: #{tpu_custom_call.1} parent=1 // pred_region
      %101 = dma.done [#allocation9], 4096
    $region49: #{tpu_custom_call.1} parent=1 // pred_fallthru
      _
    // Predicated region
    $region50: #{tpu_custom_call.1} parent=1 // pred_check
      _
    $region51: #{tpu_custom_call.1} parent=1 // pred_check_branch
      %103 = sbr.rel (0) target = $region53
    $region52: #{tpu_custom_call.1} parent=1 // pred_region
      %104 = dma.done [#allocation12], 2048
    $region53: #{tpu_custom_call.1} parent=1 // pred_fallthru
      _
    %v105 = vld [vmem:[#allocation2] sm:$0xff]
    %v106 = vld [vmem:[#allocation5] sm:$0xff]
    %v107 = vld [vmem:[%s6] sm:$0xff]
    %v108 = vld [vmem:[#allocation7] sm:$0xff]
    %v109 = vld [vmem:[#allocation7 + $0x8] sm:$0xff]
    %v110 = vld [vmem:[#allocation7 + $0x10] sm:$0xff]
    %v111 = vld [vmem:[#allocation7 + $0x18] sm:$0xff]
    %v112 = vld [vmem:[#allocation7 + $0x20] sm:$0xff]
    %v113 = vld [vmem:[#allocation7 + $0x28] sm:$0xff]
    %v114 = vld [vmem:[#allocation7 + $0x30] sm:$0xff]
    %v115 = vld [vmem:[#allocation7 + $0x38] sm:$0xff]
    %v116 = vld [vmem:[#allocation7 + $0x40] sm:$0xff]
    %v117 = vld [vmem:[#allocation7 + $0x48] sm:$0xff]
    %v118 = vld [vmem:[#allocation7 + $0x50] sm:$0xff]
    %v119 = vld [vmem:[#allocation7 + $0x58] sm:$0xff]
    %v120 = vld [vmem:[#allocation7 + $0x60] sm:$0xff]
    %v121 = vld [vmem:[#allocation7 + $0x68] sm:$0xff]
    %v122 = vld [vmem:[#allocation7 + $0x70] sm:$0xff]
    %v123 = vld [vmem:[#allocation7 + $0x78] sm:$0xff]
    %v124 = vld [vmem:[#allocation7 + $0x80] sm:$0xff]
    %v125 = vld [vmem:[#allocation7 + $0x88] sm:$0xff]
    %v126 = vld [vmem:[#allocation7 + $0x90] sm:$0xff]
    %v127 = vld [vmem:[#allocation7 + $0x98] sm:$0xff]
    %v128 = vld [vmem:[#allocation7 + $0xa0] sm:$0xff]
    %v129 = vld [vmem:[#allocation7 + $0xa8] sm:$0xff]
    %v130 = vld [vmem:[#allocation7 + $0xb0] sm:$0xff]
    %v131 = vld [vmem:[#allocation7 + $0xb8] sm:$0xff]
    %v132 = vld [vmem:[#allocation7 + $0xc0] sm:$0xff]
    %v133 = vld [vmem:[#allocation7 + $0xc8] sm:$0xff]
    %v134 = vld [vmem:[#allocation7 + $0xd0] sm:$0xff]
    %v135 = vld [vmem:[#allocation7 + $0xd8] sm:$0xff]
    %v136 = vld [vmem:[#allocation7 + $0xe0] sm:$0xff]
    %v137 = vld [vmem:[#allocation7 + $0xe8] sm:$0xff]
    %v138 = vld [vmem:[#allocation7 + $0xf0] sm:$0xff]
    %v139 = vld [vmem:[#allocation7 + $0xf8] sm:$0xff]
    %140 = vmatprep.subr.mxu0 %v109
    %141 = vmatpush1.msra.mxu0 %v108
    %142 = vmatprep.subr.mxu0 %v111
    %143 = vmatpush1.msra.mxu0 %v110
    %144 = vmatprep.subr.mxu0 %v113
    %145 = vmatpush1.msra.mxu0 %v112
    %146 = vmatprep.subr.mxu0 %v115
    %147 = vmatpush1.msra.mxu0 %v114
    %148 = vmatprep.subr.mxu0 %v117
    %149 = vmatpush1.msra.mxu0 %v116
    %150 = vmatprep.subr.mxu0 %v119
    %151 = vmatpush1.msra.mxu0 %v118
    %152 = vmatprep.subr.mxu0 %v121
    %153 = vmatpush1.msra.mxu0 %v120
    %154 = vmatprep.subr.mxu0 %v123
    %155 = vmatpush1.msra.mxu0 %v122
    %156 = vmatprep.subr.mxu0 %v125
    %157 = vmatpush1.msra.mxu0 %v124
    %158 = vmatprep.subr.mxu0 %v127
    %159 = vmatpush1.msra.mxu0 %v126
    %160 = vmatprep.subr.mxu0 %v129
    %161 = vmatpush1.msra.mxu0 %v128
    %162 = vmatprep.subr.mxu0 %v131
    %163 = vmatpush1.msra.mxu0 %v130
    %164 = vmatprep.subr.mxu0 %v133
    %165 = vmatpush1.msra.mxu0 %v132
    %166 = vmatprep.subr.mxu0 %v135
    %167 = vmatpush1.msra.mxu0 %v134
    %168 = vmatprep.subr.mxu0 %v137
    %169 = vmatpush1.msra.mxu0 %v136
    %170 = vmatprep.subr.mxu0 %v139
    %171 = vmatpush1.msra.mxu0 %v138
    %172 = vmatprep.subr.mxu0 0.0
    %173 = vmatpush1.msra.mxu0 0.0
    %174 = vmatprep.subr.mxu0 0.0
    %175 = vmatpush1.msra.mxu0 0.0
    %176 = vmatprep.subr.mxu0 0.0
    %177 = vmatpush1.msra.mxu0 0.0
    %178 = vmatprep.subr.mxu0 0.0
    %179 = vmatpush1.msra.mxu0 0.0
    %180 = vmatprep.subr.mxu0 0.0
    %181 = vmatpush1.msra.mxu0 0.0
    %182 = vmatprep.subr.mxu0 0.0
    %183 = vmatpush1.msra.mxu0 0.0
    %184 = vmatprep.subr.mxu0 0.0
    %185 = vmatpush1.msra.mxu0 0.0
    %186 = vmatprep.subr.mxu0 0.0
    %187 = vmatpush1.msra.mxu0 0.0
    %188 = vmatprep.subr.mxu0 0.0
    %189 = vmatpush1.msra.mxu0 0.0
    %190 = vmatprep.subr.mxu0 0.0
    %191 = vmatpush1.msra.mxu0 0.0
    %192 = vmatprep.subr.mxu0 0.0
    %193 = vmatpush1.msra.mxu0 0.0
    %194 = vmatprep.subr.mxu0 0.0
    %195 = vmatpush1.msra.mxu0 0.0
    %196 = vmatprep.subr.mxu0 0.0
    %197 = vmatpush1.msra.mxu0 0.0
    %198 = vmatprep.subr.mxu0 0.0
    %199 = vmatpush1.msra.mxu0 0.0
    %200 = vmatprep.subr.mxu0 0.0
    %201 = vmatpush1.msra.mxu0 0.0
    %202 = vmatprep.subr.mxu0 0.0
    %203 = vmatpush1.msra.mxu0 0.0
    %204 = vmatprep.mubr.f32.mxu0 0.0
    %205 = vmatmul.mubr.f32.gmra.mrb[0].mxu0 %v105
    %v206 = vpop.f32.mrb[0].mxu0
    %v207 = vadd.f32 0.0, %v206
    %v208 = vpop.f32.mrb[0].mxu0
    %v209 = vadd.f32 0.0, %v208
    %210 = vdwg.mxu0
    %v211 = vlaneseq
    %v212 = vshrl.u32 %v211, 7
    %v213 = vsub.s32 0, %v212
    %v214 = vrot.slane %v107, %v213
    %v215 = vadd.f32 %v207, %v214
    %v216 = vlaneseq
    %v217 = vshrl.u32 %v216, 7
    %v218 = vsub.s32 1, %v217
    %v219 = vrot.slane %v107, %v218
    %v220 = vadd.f32 %v209, %v219
    %v221 = vld [vmem:[#allocation8] sm:$0xff]
    %v222 = vld [vmem:[#allocation8 + $0x8] sm:$0xff]
    %v223 = vld [vmem:[#allocation8 + $0x10] sm:$0xff]
    %v224 = vld [vmem:[#allocation8 + $0x18] sm:$0xff]
    %v225 = vld [vmem:[#allocation8 + $0x20] sm:$0xff]
    %v226 = vld [vmem:[#allocation8 + $0x28] sm:$0xff]
    %v227 = vld [vmem:[#allocation8 + $0x30] sm:$0xff]
    %v228 = vld [vmem:[#allocation8 + $0x38] sm:$0xff]
    %v229 = vld [vmem:[#allocation8 + $0x40] sm:$0xff]
    %v230 = vld [vmem:[#allocation8 + $0x48] sm:$0xff]
    %v231 = vld [vmem:[#allocation8 + $0x50] sm:$0xff]
    %v232 = vld [vmem:[#allocation8 + $0x58] sm:$0xff]
    %v233 = vld [vmem:[#allocation8 + $0x60] sm:$0xff]
    %v234 = vld [vmem:[#allocation8 + $0x68] sm:$0xff]
    %v235 = vld [vmem:[#allocation8 + $0x70] sm:$0xff]
    %v236 = vld [vmem:[#allocation8 + $0x78] sm:$0xff]
    %v237 = vld [vmem:[#allocation8 + $0x80] sm:$0xff]
    %v238 = vld [vmem:[#allocation8 + $0x88] sm:$0xff]
    %v239 = vld [vmem:[#allocation8 + $0x90] sm:$0xff]
    %v240 = vld [vmem:[#allocation8 + $0x98] sm:$0xff]
    %v241 = vld [vmem:[#allocation8 + $0xa0] sm:$0xff]
    %v242 = vld [vmem:[#allocation8 + $0xa8] sm:$0xff]
    %v243 = vld [vmem:[#allocation8 + $0xb0] sm:$0xff]
    %v244 = vld [vmem:[#allocation8 + $0xb8] sm:$0xff]
    %v245 = vld [vmem:[#allocation8 + $0xc0] sm:$0xff]
    %v246 = vld [vmem:[#allocation8 + $0xc8] sm:$0xff]
    %v247 = vld [vmem:[#allocation8 + $0xd0] sm:$0xff]
    %v248 = vld [vmem:[#allocation8 + $0xd8] sm:$0xff]
    %v249 = vld [vmem:[#allocation8 + $0xe0] sm:$0xff]
    %v250 = vld [vmem:[#allocation8 + $0xe8] sm:$0xff]
    %v251 = vld [vmem:[#allocation8 + $0xf0] sm:$0xff]
    %v252 = vld [vmem:[#allocation8 + $0xf8] sm:$0xff]
    %v253 = vld [vmem:[#allocation8 + $0x100] sm:$0xff]
    %v254 = vld [vmem:[#allocation8 + $0x108] sm:$0xff]
    %v255 = vld [vmem:[#allocation8 + $0x110] sm:$0xff]
    %v256 = vld [vmem:[#allocation8 + $0x118] sm:$0xff]
    %v257 = vld [vmem:[#allocation8 + $0x120] sm:$0xff]
    %v258 = vld [vmem:[#allocation8 + $0x128] sm:$0xff]
    %v259 = vld [vmem:[#allocation8 + $0x130] sm:$0xff]
    %v260 = vld [vmem:[#allocation8 + $0x138] sm:$0xff]
    %v261 = vld [vmem:[#allocation8 + $0x140] sm:$0xff]
    %v262 = vld [vmem:[#allocation8 + $0x148] sm:$0xff]
    %v263 = vld [vmem:[#allocation8 + $0x150] sm:$0xff]
    %v264 = vld [vmem:[#allocation8 + $0x158] sm:$0xff]
    %v265 = vld [vmem:[#allocation8 + $0x160] sm:$0xff]
    %v266 = vld [vmem:[#allocation8 + $0x168] sm:$0xff]
    %v267 = vld [vmem:[#allocation8 + $0x170] sm:$0xff]
    %v268 = vld [vmem:[#allocation8 + $0x178] sm:$0xff]
    %v269 = vld [vmem:[#allocation8 + $0x180] sm:$0xff]
    %v270 = vld [vmem:[#allocation8 + $0x188] sm:$0xff]
    %v271 = vld [vmem:[#allocation8 + $0x190] sm:$0xff]
    %v272 = vld [vmem:[#allocation8 + $0x198] sm:$0xff]
    %v273 = vld [vmem:[#allocation8 + $0x1a0] sm:$0xff]
    %v274 = vld [vmem:[#allocation8 + $0x1a8] sm:$0xff]
    %v275 = vld [vmem:[#allocation8 + $0x1b0] sm:$0xff]
    %v276 = vld [vmem:[#allocation8 + $0x1b8] sm:$0xff]
    %v277 = vld [vmem:[#allocation8 + $0x1c0] sm:$0xff]
    %v278 = vld [vmem:[#allocation8 + $0x1c8] sm:$0xff]
    %v279 = vld [vmem:[#allocation8 + $0x1d0] sm:$0xff]
    %v280 = vld [vmem:[#allocation8 + $0x1d8] sm:$0xff]
    %v281 = vld [vmem:[#allocation8 + $0x1e0] sm:$0xff]
    %v282 = vld [vmem:[#allocation8 + $0x1e8] sm:$0xff]
    %v283 = vld [vmem:[#allocation8 + $0x1f0] sm:$0xff]
    %v284 = vld [vmem:[#allocation8 + $0x1f8] sm:$0xff]
    %285 = vmatprep.subr.mxu0 %v222
    %286 = vmatpush1.msra.mxu0 %v221
    %287 = vmatprep.subr.mxu0 %v226
    %288 = vmatpush1.msra.mxu0 %v225
    %289 = vmatprep.subr.mxu0 %v230
    %290 = vmatpush1.msra.mxu0 %v229
    %291 = vmatprep.subr.mxu0 %v234
    %292 = vmatpush1.msra.mxu0 %v233
    %293 = vmatprep.subr.mxu0 %v238
    %294 = vmatpush1.msra.mxu0 %v237
    %295 = vmatprep.subr.mxu0 %v242
    %296 = vmatpush1.msra.mxu0 %v241
    %297 = vmatprep.subr.mxu0 %v246
    %298 = vmatpush1.msra.mxu0 %v245
    %299 = vmatprep.subr.mxu0 %v250
    %300 = vmatpush1.msra.mxu0 %v249
    %301 = vmatprep.subr.mxu0 %v254
    %302 = vmatpush1.msra.mxu0 %v253
    %303 = vmatprep.subr.mxu0 %v258
    %304 = vmatpush1.msra.mxu0 %v257
    %305 = vmatprep.subr.mxu0 %v262
    %306 = vmatpush1.msra.mxu0 %v261
    %307 = vmatprep.subr.mxu0 %v266
    %308 = vmatpush1.msra.mxu0 %v265
    %309 = vmatprep.subr.mxu0 %v270
    %310 = vmatpush1.msra.mxu0 %v269
    %311 = vmatprep.subr.mxu0 %v274
    %312 = vmatpush1.msra.mxu0 %v273
    %313 = vmatprep.subr.mxu0 %v278
    %314 = vmatpush1.msra.mxu0 %v277
    %315 = vmatprep.subr.mxu0 %v282
    %316 = vmatpush1.msra.mxu0 %v281
    %317 = vmatprep.subr.mxu0 0.0
    %318 = vmatpush1.msra.mxu0 0.0
    %319 = vmatprep.subr.mxu0 0.0
    %320 = vmatpush1.msra.mxu0 0.0
    %321 = vmatprep.subr.mxu0 0.0
    %322 = vmatpush1.msra.mxu0 0.0
    %323 = vmatprep.subr.mxu0 0.0
    %324 = vmatpush1.msra.mxu0 0.0
    %325 = vmatprep.subr.mxu0 0.0
    %326 = vmatpush1.msra.mxu0 0.0
    %327 = vmatprep.subr.mxu0 0.0
    %328 = vmatpush1.msra.mxu0 0.0
    %329 = vmatprep.subr.mxu0 0.0
    %330 = vmatpush1.msra.mxu0 0.0
    %331 = vmatprep.subr.mxu0 0.0
    %332 = vmatpush1.msra.mxu0 0.0
    %333 = vmatprep.subr.mxu0 0.0
    %334 = vmatpush1.msra.mxu0 0.0
    %335 = vmatprep.subr.mxu0 0.0
    %336 = vmatpush1.msra.mxu0 0.0
    %337 = vmatprep.subr.mxu0 0.0
    %338 = vmatpush1.msra.mxu0 0.0
    %339 = vmatprep.subr.mxu0 0.0
    %340 = vmatpush1.msra.mxu0 0.0
    %341 = vmatprep.subr.mxu0 0.0
    %342 = vmatpush1.msra.mxu0 0.0
    %343 = vmatprep.subr.mxu0 0.0
    %344 = vmatpush1.msra.mxu0 0.0
    %345 = vmatprep.subr.mxu0 0.0
    %346 = vmatpush1.msra.mxu0 0.0
    %347 = vmatprep.subr.mxu0 0.0
    %348 = vmatpush1.msra.mxu0 0.0
    %349 = vmatprep.mubr.f32.mxu0 0.0
    %350 = vmatmul.mubr.f32.gmra.mrb[0].mxu0 %v106
    %v351 = vpop.f32.mrb[0].mxu0
    %v352 = vadd.f32 0.0, %v351
    %v353 = vpop.f32.mrb[0].mxu0
    %v354 = vadd.f32 0.0, %v353
    %355 = vdwg.mxu0
    %356 = vmatprep.subr.mxu0 %v224
    %357 = vmatpush1.msra.mxu0 %v223
    %358 = vmatprep.subr.mxu0 %v228
    %359 = vmatpush1.msra.mxu0 %v227
    %360 = vmatprep.subr.mxu0 %v232
    %361 = vmatpush1.msra.mxu0 %v231
    %362 = vmatprep.subr.mxu0 %v236
    %363 = vmatpush1.msra.mxu0 %v235
    %364 = vmatprep.subr.mxu0 %v240
    %365 = vmatpush1.msra.mxu0 %v239
    %366 = vmatprep.subr.mxu0 %v244
    %367 = vmatpush1.msra.mxu0 %v243
    %368 = vmatprep.subr.mxu0 %v248
    %369 = vmatpush1.msra.mxu0 %v247
    %370 = vmatprep.subr.mxu0 %v252
    %371 = vmatpush1.msra.mxu0 %v251
    %372 = vmatprep.subr.mxu0 %v256
    %373 = vmatpush1.msra.mxu0 %v255
    %374 = vmatprep.subr.mxu0 %v260
    %375 = vmatpush1.msra.mxu0 %v259
    %376 = vmatprep.subr.mxu0 %v264
    %377 = vmatpush1.msra.mxu0 %v263
    %378 = vmatprep.subr.mxu0 %v268
    %379 = vmatpush1.msra.mxu0 %v267
    %380 = vmatprep.subr.mxu0 %v272
    %381 = vmatpush1.msra.mxu0 %v271
    %382 = vmatprep.subr.mxu0 %v276
    %383 = vmatpush1.msra.mxu0 %v275
    %384 = vmatprep.subr.mxu0 %v280
    %385 = vmatpush1.msra.mxu0 %v279
    %386 = vmatprep.subr.mxu0 %v284
    %387 = vmatpush1.msra.mxu0 %v283
    %388 = vmatprep.subr.mxu0 0.0
    %389 = vmatpush1.msra.mxu0 0.0
    %390 = vmatprep.subr.mxu0 0.0
    %391 = vmatpush1.msra.mxu0 0.0
    %392 = vmatprep.subr.mxu0 0.0
    %393 = vmatpush1.msra.mxu0 0.0
    %394 = vmatprep.subr.mxu0 0.0
    %395 = vmatpush1.msra.mxu0 0.0
    %396 = vmatprep.subr.mxu0 0.0
    %397 = vmatpush1.msra.mxu0 0.0
    %398 = vmatprep.subr.mxu0 0.0
    %399 = vmatpush1.msra.mxu0 0.0
    %400 = vmatprep.subr.mxu0 0.0
    %401 = vmatpush1.msra.mxu0 0.0
    %402 = vmatprep.subr.mxu0 0.0
    %403 = vmatpush1.msra.mxu0 0.0
    %404 = vmatprep.subr.mxu0 0.0
    %405 = vmatpush1.msra.mxu0 0.0
    %406 = vmatprep.subr.mxu0 0.0
    %407 = vmatpush1.msra.mxu0 0.0
    %408 = vmatprep.subr.mxu0 0.0
    %409 = vmatpush1.msra.mxu0 0.0
    %410 = vmatprep.subr.mxu0 0.0
    %411 = vmatpush1.msra.mxu0 0.0
    %412 = vmatprep.subr.mxu0 0.0
    %413 = vmatpush1.msra.mxu0 0.0
    %414 = vmatprep.subr.mxu0 0.0
    %415 = vmatpush1.msra.mxu0 0.0
    %416 = vmatprep.subr.mxu0 0.0
    %417 = vmatpush1.msra.mxu0 0.0
    %418 = vmatprep.subr.mxu0 0.0
    %419 = vmatpush1.msra.mxu0 0.0
    %420 = vmatprep.mubr.f32.mxu0 0.0
    %421 = vmatmul.mubr.f32.gmra.mrb[0].mxu0 %v106
    %v422 = vpop.f32.mrb[0].mxu0
    %v423 = vadd.f32 0.0, %v422
    %v424 = vpop.f32.mrb[0].mxu0
    %v425 = vadd.f32 0.0, %v424
    %426 = vdwg.mxu0
    %v427 = vlaneseq
    %v428 = vshrl.u32 %v427, 7
    %v429 = vsub.s32 2, %v428
    %v430 = vrot.slane %v107, %v429
    %v431 = vadd.f32 %v352, %v430
    %v432 = vtanh.pop %v431
    %v433 = vlaneseq
    %v434 = vshrl.u32 %v433, 7
    %v435 = vsub.s32 3, %v434
    %v436 = vrot.slane %v107, %v435
    %v437 = vadd.f32 %v354, %v436
    %v438 = vxor.u32 %v437, 2147483648
    %v439 = vmul.f32 %v438, 1.442695
    %v440 = vpow.pop %v439
    %v441 = vadd.f32 %v440, 1.0
    %v442 = vrcp.pop %v441
    %v443 = vmul.f32 1.0, %v442
    %v444 = vlaneseq
    %v445 = vshrl.u32 %v444, 7
    %v446 = vsub.s32 4, %v445
    %v447 = vrot.slane %v107, %v446
    %v448 = vadd.f32 %v423, %v447
    %v449 = vsub.f32 0.0, %v448
    %v450 = vxor.u32 %v449, 2147483648
    %v451 = vmul.f32 %v450, 1.442695
    %v452 = vpow.pop %v451
    %v453 = vadd.f32 %v452, 1.0
    %v454 = vrcp.pop %v453
    %v455 = vmul.f32 1.0, %v454
    %v456 = vlaneseq
    %v457 = vshrl.u32 %v456, 7
    %v458 = vsub.s32 5, %v457
    %v459 = vrot.slane %v107, %v458
    %v460 = vadd.f32 %v425, %v459
    %v461 = vxor.u32 %v460, 2147483648
    %v462 = vmul.f32 %v461, 1.442695
    %v463 = vpow.pop %v462
    %v464 = vadd.f32 %v463, 1.0
    %v465 = vrcp.pop %v464
    %v466 = vmul.f32 1.0, %v465
    %v467 = vmul.f32 %v215, %v432
    %v468 = vmul.f32 %v215, %v443
    %v469 = vmul.f32 %v468, %v455
    %v470 = vand.u32 2147483647, %v215
    %v471 = vadd.f32 %v470, 1.0
    %v472 = vlog2.pop %v471
    %v473 = vmul.f32 %v472, 0.6931472
    %v474 = vmul.f32 -0.5, %v470
    %v475 = vadd.f32 %v474, 1.0
    %v476 = vmul.f32 %v475, %v470
    %v477 = vand.u32 2147483647, %v470
    %vm478 = vcmp.lt.f32.partialorder %v477, 0.0004427343
    %v479 = vsel %vm478, %v476, %v473
    %v480 = vmul.f32 %v466, %v479
    %v481 = vsub.f32 1.0, %v480
    %v482 = vmul.f32 %v215, %v481
    %v483 = vld [vmem:[#allocation11] sm:$0xff]
    %v484 = vld [vmem:[#allocation11 + $0x8] sm:$0xff]
    %v485 = vld [vmem:[#allocation11 + $0x10] sm:$0xff]
    %v486 = vld [vmem:[#allocation11 + $0x18] sm:$0xff]
    %v487 = vld [vmem:[#allocation11 + $0x20] sm:$0xff]
    %v488 = vld [vmem:[#allocation11 + $0x28] sm:$0xff]
    %v489 = vld [vmem:[#allocation11 + $0x30] sm:$0xff]
    %v490 = vld [vmem:[#allocation11 + $0x38] sm:$0xff]
    %v491 = vld [vmem:[#allocation11 + $0x40] sm:$0xff]
    %v492 = vld [vmem:[#allocation11 + $0x48] sm:$0xff]
    %v493 = vld [vmem:[#allocation11 + $0x50] sm:$0xff]
    %v494 = vld [vmem:[#allocation11 + $0x58] sm:$0xff]
    %v495 = vld [vmem:[#allocation11 + $0x60] sm:$0xff]
    %v496 = vld [vmem:[#allocation11 + $0x68] sm:$0xff]
    %v497 = vld [vmem:[#allocation11 + $0x70] sm:$0xff]
    %v498 = vld [vmem:[#allocation11 + $0x78] sm:$0xff]
    %v499 = vmul.f32 %v220, %v467
    %500 = vmatprep.subr.mxu0 0.0
    %501 = vmatpush1.msra.mxu0 %v483
    %502 = vmatprep.subr.mxu0 0.0
    %503 = vmatpush1.msra.mxu0 %v484
    %504 = vmatprep.subr.mxu0 0.0
    %505 = vmatpush1.msra.mxu0 %v485
    %506 = vmatprep.subr.mxu0 0.0
    %507 = vmatpush1.msra.mxu0 %v486
    %508 = vmatprep.subr.mxu0 0.0
    %509 = vmatpush1.msra.mxu0 %v487
    %510 = vmatprep.subr.mxu0 0.0
    %511 = vmatpush1.msra.mxu0 %v488
    %512 = vmatprep.subr.mxu0 0.0
    %513 = vmatpush1.msra.mxu0 %v489
    %514 = vmatprep.subr.mxu0 0.0
    %515 = vmatpush1.msra.mxu0 %v490
    %516 = vmatprep.subr.mxu0 0.0
    %517 = vmatpush1.msra.mxu0 %v491
    %518 = vmatprep.subr.mxu0 0.0
    %519 = vmatpush1.msra.mxu0 %v492
    %520 = vmatprep.subr.mxu0 0.0
    %521 = vmatpush1.msra.mxu0 %v493
    %522 = vmatprep.subr.mxu0 0.0
    %523 = vmatpush1.msra.mxu0 %v494
    %524 = vmatprep.subr.mxu0 0.0
    %525 = vmatpush1.msra.mxu0 %v495
    %526 = vmatprep.subr.mxu0 0.0
    %527 = vmatpush1.msra.mxu0 %v496
    %528 = vmatprep.subr.mxu0 0.0
    %529 = vmatpush1.msra.mxu0 %v497
    %530 = vmatprep.subr.mxu0 0.0
    %531 = vmatpush1.msra.mxu0 %v498
    %532 = vmatprep.subr.mxu0 0.0
    %533 = vmatpush1.msra.mxu0 0.0
    %534 = vmatprep.subr.mxu0 0.0
    %535 = vmatpush1.msra.mxu0 0.0
    %536 = vmatprep.subr.mxu0 0.0
    %537 = vmatpush1.msra.mxu0 0.0
    %538 = vmatprep.subr.mxu0 0.0
    %539 = vmatpush1.msra.mxu0 0.0
    %540 = vmatprep.subr.mxu0 0.0
    %541 = vmatpush1.msra.mxu0 0.0
    %542 = vmatprep.subr.mxu0 0.0
    %543 = vmatpush1.msra.mxu0 0.0
    %544 = vmatprep.subr.mxu0 0.0
    %545 = vmatpush1.msra.mxu0 0.0
    %546 = vmatprep.subr.mxu0 0.0
    %547 = vmatpush1.msra.mxu0 0.0
    %548 = vmatprep.subr.mxu0 0.0
    %549 = vmatpush1.msra.mxu0 0.0
    %550 = vmatprep.subr.mxu0 0.0
    %551 = vmatpush1.msra.mxu0 0.0
    %552 = vmatprep.subr.mxu0 0.0
    %553 = vmatpush1.msra.mxu0 0.0
    %554 = vmatprep.subr.mxu0 0.0
    %555 = vmatpush1.msra.mxu0 0.0
    %556 = vmatprep.subr.mxu0 0.0
    %557 = vmatpush1.msra.mxu0 0.0
    %558 = vmatprep.subr.mxu0 0.0
    %559 = vmatpush1.msra.mxu0 0.0
    %560 = vmatprep.subr.mxu0 0.0
    %561 = vmatpush1.msra.mxu0 0.0
    %562 = vmatprep.subr.mxu0 0.0
    %563 = vmatpush1.msra.mxu0 0.0
    %564 = vmatprep.mubr.f32.mxu0 0.0
    %565 = vmatmul.mubr.f32.gmra.mrb[0].mxu0 %v499
    %v566 = vpop.f32.mrb[0].mxu0
    %v567 = vadd.f32 0.0, %v566
    %v568 = vpop.f32.mrb[0].mxu0
    %569 = vdwg.mxu0
    %v570 = vmul.f32 %v220, %v469
    %571 = vmatprep.subr.mxu0 0.0
    %572 = vmatpush1.msra.mxu0 %v483
    %573 = vmatprep.subr.mxu0 0.0
    %574 = vmatpush1.msra.mxu0 %v484
    %575 = vmatprep.subr.mxu0 0.0
    %576 = vmatpush1.msra.mxu0 %v485
    %577 = vmatprep.subr.mxu0 0.0
    %578 = vmatpush1.msra.mxu0 %v486
    %579 = vmatprep.subr.mxu0 0.0
    %580 = vmatpush1.msra.mxu0 %v487
    %581 = vmatprep.subr.mxu0 0.0
    %582 = vmatpush1.msra.mxu0 %v488
    %583 = vmatprep.subr.mxu0 0.0
    %584 = vmatpush1.msra.mxu0 %v489
    %585 = vmatprep.subr.mxu0 0.0
    %586 = vmatpush1.msra.mxu0 %v490
    %587 = vmatprep.subr.mxu0 0.0
    %588 = vmatpush1.msra.mxu0 %v491
    %589 = vmatprep.subr.mxu0 0.0
    %590 = vmatpush1.msra.mxu0 %v492
    %591 = vmatprep.subr.mxu0 0.0
    %592 = vmatpush1.msra.mxu0 %v493
    %593 = vmatprep.subr.mxu0 0.0
    %594 = vmatpush1.msra.mxu0 %v494
    %595 = vmatprep.subr.mxu0 0.0
    %596 = vmatpush1.msra.mxu0 %v495
    %597 = vmatprep.subr.mxu0 0.0
    %598 = vmatpush1.msra.mxu0 %v496
    %599 = vmatprep.subr.mxu0 0.0
    %600 = vmatpush1.msra.mxu0 %v497
    %601 = vmatprep.subr.mxu0 0.0
    %602 = vmatpush1.msra.mxu0 %v498
    %603 = vmatprep.subr.mxu0 0.0
    %604 = vmatpush1.msra.mxu0 0.0
    %605 = vmatprep.subr.mxu0 0.0
    %606 = vmatpush1.msra.mxu0 0.0
    %607 = vmatprep.subr.mxu0 0.0
    %608 = vmatpush1.msra.mxu0 0.0
    %609 = vmatprep.subr.mxu0 0.0
    %610 = vmatpush1.msra.mxu0 0.0
    %611 = vmatprep.subr.mxu0 0.0
    %612 = vmatpush1.msra.mxu0 0.0
    %613 = vmatprep.subr.mxu0 0.0
    %614 = vmatpush1.msra.mxu0 0.0
    %615 = vmatprep.subr.mxu0 0.0
    %616 = vmatpush1.msra.mxu0 0.0
    %617 = vmatprep.subr.mxu0 0.0
    %618 = vmatpush1.msra.mxu0 0.0
    %619 = vmatprep.subr.mxu0 0.0
    %620 = vmatpush1.msra.mxu0 0.0
    %621 = vmatprep.subr.mxu0 0.0
    %622 = vmatpush1.msra.mxu0 0.0
    %623 = vmatprep.subr.mxu0 0.0
    %624 = vmatpush1.msra.mxu0 0.0
    %625 = vmatprep.subr.mxu0 0.0
    %626 = vmatpush1.msra.mxu0 0.0
    %627 = vmatprep.subr.mxu0 0.0
    %628 = vmatpush1.msra.mxu0 0.0
    %629 = vmatprep.subr.mxu0 0.0
    %630 = vmatpush1.msra.mxu0 0.0
    %631 = vmatprep.subr.mxu0 0.0
    %632 = vmatpush1.msra.mxu0 0.0
    %633 = vmatprep.subr.mxu0 0.0
    %634 = vmatpush1.msra.mxu0 0.0
    %635 = vmatprep.mubr.f32.mxu0 0.0
    %636 = vmatmul.mubr.f32.gmra.mrb[0].mxu0 %v570
    %v637 = vpop.f32.mrb[0].mxu0
    %v638 = vadd.f32 0.0, %v637
    %v639 = vpop.f32.mrb[0].mxu0
    %640 = vdwg.mxu0
    %v641 = vmul.f32 %v220, %v482
    %642 = vmatprep.subr.mxu0 0.0
    %643 = vmatpush1.msra.mxu0 %v483
    %644 = vmatprep.subr.mxu0 0.0
    %645 = vmatpush1.msra.mxu0 %v484
    %646 = vmatprep.subr.mxu0 0.0
    %647 = vmatpush1.msra.mxu0 %v485
    %648 = vmatprep.subr.mxu0 0.0
    %649 = vmatpush1.msra.mxu0 %v486
    %650 = vmatprep.subr.mxu0 0.0
    %651 = vmatpush1.msra.mxu0 %v487
    %652 = vmatprep.subr.mxu0 0.0
    %653 = vmatpush1.msra.mxu0 %v488
    %654 = vmatprep.subr.mxu0 0.0
    %655 = vmatpush1.msra.mxu0 %v489
    %656 = vmatprep.subr.mxu0 0.0
    %657 = vmatpush1.msra.mxu0 %v490
    %658 = vmatprep.subr.mxu0 0.0
    %659 = vmatpush1.msra.mxu0 %v491
    %660 = vmatprep.subr.mxu0 0.0
    %661 = vmatpush1.msra.mxu0 %v492
    %662 = vmatprep.subr.mxu0 0.0
    %663 = vmatpush1.msra.mxu0 %v493
    %664 = vmatprep.subr.mxu0 0.0
    %665 = vmatpush1.msra.mxu0 %v494
    %666 = vmatprep.subr.mxu0 0.0
    %667 = vmatpush1.msra.mxu0 %v495
    %668 = vmatprep.subr.mxu0 0.0
    %669 = vmatpush1.msra.mxu0 %v496
    %670 = vmatprep.subr.mxu0 0.0
    %671 = vmatpush1.msra.mxu0 %v497
    %672 = vmatprep.subr.mxu0 0.0
    %673 = vmatpush1.msra.mxu0 %v498
    %674 = vmatprep.subr.mxu0 0.0
    %675 = vmatpush1.msra.mxu0 0.0
    %676 = vmatprep.subr.mxu0 0.0
    %677 = vmatpush1.msra.mxu0 0.0
    %678 = vmatprep.subr.mxu0 0.0
    %679 = vmatpush1.msra.mxu0 0.0
    %680 = vmatprep.subr.mxu0 0.0
    %681 = vmatpush1.msra.mxu0 0.0
    %682 = vmatprep.subr.mxu0 0.0
    %683 = vmatpush1.msra.mxu0 0.0
    %684 = vmatprep.subr.mxu0 0.0
    %685 = vmatpush1.msra.mxu0 0.0
    %686 = vmatprep.subr.mxu0 0.0
    %687 = vmatpush1.msra.mxu0 0.0
    %688 = vmatprep.subr.mxu0 0.0
    %689 = vmatpush1.msra.mxu0 0.0
    %690 = vmatprep.subr.mxu0 0.0
    %691 = vmatpush1.msra.mxu0 0.0
    %692 = vmatprep.subr.mxu0 0.0
    %693 = vmatpush1.msra.mxu0 0.0
    %694 = vmatprep.subr.mxu0 0.0
    %695 = vmatpush1.msra.mxu0 0.0
    %696 = vmatprep.subr.mxu0 0.0
    %697 = vmatpush1.msra.mxu0 0.0
    %698 = vmatprep.subr.mxu0 0.0
    %699 = vmatpush1.msra.mxu0 0.0
    %700 = vmatprep.subr.mxu0 0.0
    %701 = vmatpush1.msra.mxu0 0.0
    %702 = vmatprep.subr.mxu0 0.0
    %703 = vmatpush1.msra.mxu0 0.0
    %704 = vmatprep.subr.mxu0 0.0
    %705 = vmatpush1.msra.mxu0 0.0
    %706 = vmatprep.mubr.f32.mxu0 0.0
    %707 = vmatmul.mubr.f32.gmra.mrb[0].mxu0 %v641
    %v708 = vpop.f32.mrb[0].mxu0
    %v709 = vadd.f32 0.0, %v708
    %v710 = vpop.f32.mrb[0].mxu0
    %711 = vdwg.mxu0
    %v712 = vmax.f32 %v567, %v638
    %v713 = vmax.f32 %v712, %v709
    %v714 = vsub.f32 %v567, %v713
    %v715 = vmul.f32 %v714, 1.442695
    %v716 = vpow.pop %v715
    %v717 = vsub.f32 %v638, %v713
    %v718 = vmul.f32 %v717, 1.442695
    %v719 = vpow.pop %v718
    %v720 = vsub.f32 %v709, %v713
    %v721 = vmul.f32 %v720, 1.442695
    %v722 = vpow.pop %v721
    %v723 = vadd.f32 %v716, %v719
    %v724 = vadd.f32 %v723, %v722
    %v725 = vrcp.pop %v724
    %v726 = vmul.f32 1.0, %v725
    %v727 = vmul.f32 %v716, %v467
    %v728 = vmul.f32 %v719, %v469
    %v729 = vadd.f32 %v727, %v728
    %v730 = vmul.f32 %v722, %v482
    %v731 = vadd.f32 %v729, %v730
    %v732 = vmul.f32 %v731, %v726
    %v733 = vld [vmem:[#allocation10] sm:$0xff]
    %v734 = vld [vmem:[#allocation10 + $0x10] sm:$0xff]
    %v735 = vld [vmem:[#allocation10 + $0x20] sm:$0xff]
    %v736 = vld [vmem:[#allocation10 + $0x30] sm:$0xff]
    %v737 = vld [vmem:[#allocation10 + $0x40] sm:$0xff]
    %v738 = vld [vmem:[#allocation10 + $0x50] sm:$0xff]
    %v739 = vld [vmem:[#allocation10 + $0x60] sm:$0xff]
    %v740 = vld [vmem:[#allocation10 + $0x70] sm:$0xff]
    %v741 = vld [vmem:[#allocation10 + $0x80] sm:$0xff]
    %v742 = vld [vmem:[#allocation10 + $0x90] sm:$0xff]
    %v743 = vld [vmem:[#allocation10 + $0xa0] sm:$0xff]
    %v744 = vld [vmem:[#allocation10 + $0xb0] sm:$0xff]
    %v745 = vld [vmem:[#allocation10 + $0xc0] sm:$0xff]
    %v746 = vld [vmem:[#allocation10 + $0xd0] sm:$0xff]
    %v747 = vld [vmem:[#allocation10 + $0xe0] sm:$0xff]
    %v748 = vld [vmem:[#allocation10 + $0xf0] sm:$0xff]
    %v749 = vld [vmem:[#allocation10 + $0x8] sm:$0xff]
    %v750 = vld [vmem:[#allocation10 + $0x18] sm:$0xff]
    %v751 = vld [vmem:[#allocation10 + $0x28] sm:$0xff]
    %v752 = vld [vmem:[#allocation10 + $0x38] sm:$0xff]
    %v753 = vld [vmem:[#allocation10 + $0x48] sm:$0xff]
    %v754 = vld [vmem:[#allocation10 + $0x58] sm:$0xff]
    %v755 = vld [vmem:[#allocation10 + $0x68] sm:$0xff]
    %v756 = vld [vmem:[#allocation10 + $0x78] sm:$0xff]
    %v757 = vld [vmem:[#allocation10 + $0x88] sm:$0xff]
    %v758 = vld [vmem:[#allocation10 + $0x98] sm:$0xff]
    %v759 = vld [vmem:[#allocation10 + $0xa8] sm:$0xff]
    %v760 = vld [vmem:[#allocation10 + $0xb8] sm:$0xff]
    %v761 = vld [vmem:[#allocation10 + $0xc8] sm:$0xff]
    %v762 = vld [vmem:[#allocation10 + $0xd8] sm:$0xff]
    %v763 = vld [vmem:[#allocation10 + $0xe8] sm:$0xff]
    %v764 = vld [vmem:[#allocation10 + $0xf8] sm:$0xff]
    %765 = vmatprep.subr.mxu0 0.0
    %766 = vmatpush1.msra.mxu0 %v749
    %767 = vmatprep.subr.mxu0 0.0
    %768 = vmatpush1.msra.mxu0 %v750
    %769 = vmatprep.subr.mxu0 0.0
    %770 = vmatpush1.msra.mxu0 %v751
    %771 = vmatprep.subr.mxu0 0.0
    %772 = vmatpush1.msra.mxu0 %v752
    %773 = vmatprep.subr.mxu0 0.0
    %774 = vmatpush1.msra.mxu0 %v753
    %775 = vmatprep.subr.mxu0 0.0
    %776 = vmatpush1.msra.mxu0 %v754
    %777 = vmatprep.subr.mxu0 0.0
    %778 = vmatpush1.msra.mxu0 %v755
    %779 = vmatprep.subr.mxu0 0.0
    %780 = vmatpush1.msra.mxu0 %v756
    %781 = vmatprep.subr.mxu0 0.0
    %782 = vmatpush1.msra.mxu0 %v757
    %783 = vmatprep.subr.mxu0 0.0
    %784 = vmatpush1.msra.mxu0 %v758
    %785 = vmatprep.subr.mxu0 0.0
    %786 = vmatpush1.msra.mxu0 %v759
    %787 = vmatprep.subr.mxu0 0.0
    %788 = vmatpush1.msra.mxu0 %v760
    %789 = vmatprep.subr.mxu0 0.0
    %790 = vmatpush1.msra.mxu0 %v761
    %791 = vmatprep.subr.mxu0 0.0
    %792 = vmatpush1.msra.mxu0 %v762
    %793 = vmatprep.subr.mxu0 0.0
    %794 = vmatpush1.msra.mxu0 %v763
    %795 = vmatprep.subr.mxu0 0.0
    %796 = vmatpush1.msra.mxu0 %v764
    %797 = vmatprep.subr.mxu0 0.0
    %798 = vmatpush1.msra.mxu0 0.0
    %799 = vmatprep.subr.mxu0 0.0
    %800 = vmatpush1.msra.mxu0 0.0
    %801 = vmatprep.subr.mxu0 0.0
    %802 = vmatpush1.msra.mxu0 0.0
    %803 = vmatprep.subr.mxu0 0.0
    %804 = vmatpush1.msra.mxu0 0.0
    %805 = vmatprep.subr.mxu0 0.0
    %806 = vmatpush1.msra.mxu0 0.0
    %807 = vmatprep.subr.mxu0 0.0
    %808 = vmatpush1.msra.mxu0 0.0
    %809 = vmatprep.subr.mxu0 0.0
    %810 = vmatpush1.msra.mxu0 0.0
    %811 = vmatprep.subr.mxu0 0.0
    %812 = vmatpush1.msra.mxu0 0.0
    %813 = vmatprep.subr.mxu0 0.0
    %814 = vmatpush1.msra.mxu0 0.0
    %815 = vmatprep.subr.mxu0 0.0
    %816 = vmatpush1.msra.mxu0 0.0
    %817 = vmatprep.subr.mxu0 0.0
    %818 = vmatpush1.msra.mxu0 0.0
    %819 = vmatprep.subr.mxu0 0.0
    %820 = vmatpush1.msra.mxu0 0.0
    %821 = vmatprep.subr.mxu0 0.0
    %822 = vmatpush1.msra.mxu0 0.0
    %823 = vmatprep.subr.mxu0 0.0
    %824 = vmatpush1.msra.mxu0 0.0
    %825 = vmatprep.subr.mxu0 0.0
    %826 = vmatpush1.msra.mxu0 0.0
    %827 = vmatprep.subr.mxu0 0.0
    %828 = vmatpush1.msra.mxu0 0.0
    %829 = vmatprep.mubr.f32.mxu0 0.0
    %830 = vmatmul.mubr.f32.gmra.mrb[0].mxu0 %v732
    %v831 = vpop.f32.mrb[0].mxu0
    %v832 = vadd.f32 0.0, %v831
    %v833 = vpop.f32.mrb[0].mxu0
    %834 = vdwg.mxu0
    %835 = vmatprep.subr.mxu0 0.0
    %836 = vmatpush1.msra.mxu0 %v733
    %837 = vmatprep.subr.mxu0 0.0
    %838 = vmatpush1.msra.mxu0 %v734
    %839 = vmatprep.subr.mxu0 0.0
    %840 = vmatpush1.msra.mxu0 %v735
    %841 = vmatprep.subr.mxu0 0.0
    %842 = vmatpush1.msra.mxu0 %v736
    %843 = vmatprep.subr.mxu0 0.0
    %844 = vmatpush1.msra.mxu0 %v737
    %845 = vmatprep.subr.mxu0 0.0
    %846 = vmatpush1.msra.mxu0 %v738
    %847 = vmatprep.subr.mxu0 0.0
    %848 = vmatpush1.msra.mxu0 %v739
    %849 = vmatprep.subr.mxu0 0.0
    %850 = vmatpush1.msra.mxu0 %v740
    %851 = vmatprep.subr.mxu0 0.0
    %852 = vmatpush1.msra.mxu0 %v741
    %853 = vmatprep.subr.mxu0 0.0
    %854 = vmatpush1.msra.mxu0 %v742
    %855 = vmatprep.subr.mxu0 0.0
    %856 = vmatpush1.msra.mxu0 %v743
    %857 = vmatprep.subr.mxu0 0.0
    %858 = vmatpush1.msra.mxu0 %v744
    %859 = vmatprep.subr.mxu0 0.0
    %860 = vmatpush1.msra.mxu0 %v745
    %861 = vmatprep.subr.mxu0 0.0
    %862 = vmatpush1.msra.mxu0 %v746
    %863 = vmatprep.subr.mxu0 0.0
    %864 = vmatpush1.msra.mxu0 %v747
    %865 = vmatprep.subr.mxu0 0.0
    %866 = vmatpush1.msra.mxu0 %v748
    %867 = vmatprep.subr.mxu0 0.0
    %868 = vmatpush1.msra.mxu0 0.0
    %869 = vmatprep.subr.mxu0 0.0
    %870 = vmatpush1.msra.mxu0 0.0
    %871 = vmatprep.subr.mxu0 0.0
    %872 = vmatpush1.msra.mxu0 0.0
    %873 = vmatprep.subr.mxu0 0.0
    %874 = vmatpush1.msra.mxu0 0.0
    %875 = vmatprep.subr.mxu0 0.0
    %876 = vmatpush1.msra.mxu0 0.0
    %877 = vmatprep.subr.mxu0 0.0
    %878 = vmatpush1.msra.mxu0 0.0
    %879 = vmatprep.subr.mxu0 0.0
    %880 = vmatpush1.msra.mxu0 0.0
    %881 = vmatprep.subr.mxu0 0.0
    %882 = vmatpush1.msra.mxu0 0.0
    %883 = vmatprep.subr.mxu0 0.0
    %884 = vmatpush1.msra.mxu0 0.0
    %885 = vmatprep.subr.mxu0 0.0
    %886 = vmatpush1.msra.mxu0 0.0
    %887 = vmatprep.subr.mxu0 0.0
    %888 = vmatpush1.msra.mxu0 0.0
    %889 = vmatprep.subr.mxu0 0.0
    %890 = vmatpush1.msra.mxu0 0.0
    %891 = vmatprep.subr.mxu0 0.0
    %892 = vmatpush1.msra.mxu0 0.0
    %893 = vmatprep.subr.mxu0 0.0
    %894 = vmatpush1.msra.mxu0 0.0
    %895 = vmatprep.subr.mxu0 0.0
    %896 = vmatpush1.msra.mxu0 0.0
    %897 = vmatprep.subr.mxu0 0.0
    %898 = vmatpush1.msra.mxu0 0.0
    %899 = vmatprep.mubr.f32.mxu0 0.0
    %900 = vmatmul.mubr.f32.gmra.mrb[0].mxu0 %v215
    %v901 = vpop.f32.mrb[0].mxu0
    %v902 = vadd.f32 %v832, %v901
    %v903 = vpop.f32.mrb[0].mxu0
    %904 = vdwg.mxu0
    %v905 = vlaneseq
    %v906 = vshrl.u32 %v905, 7
    %v907 = vsub.s32 6, %v906
    %v908 = vrot.slane %v107, %v907
    %v909 = vadd.f32 %v902, %v908
    %910 = vst [vmem:[#allocation13] sm:$0xff] %v909
    // Predicated region
    $region54: #{tpu_custom_call.1} parent=1 // pred_check
      _
    $region55: #{tpu_custom_call.1} parent=1 // pred_check_branch
      %912 = sbr.rel (0) target = $region57
    $region56: #{tpu_custom_call.1} parent=1 // pred_region
      %s914 = ssub.s32 128, 128
      %915 = vsyncadd [#allocation4], %s914
      %s917 = sshll.u32 [#allocation13], 4
      %s918 = int_to_ptr.vmem [resolvable:$true] %s917
      %920 = dma.vmem_to_hbm [thread:$0]  %s918, 128, %s7, [#allocation4]
    $region57: #{tpu_custom_call.1} parent=1 // pred_fallthru
      _
    // Predicated region
    $region58: #{tpu_custom_call.1} parent=1 // pred_check
      _
    $region59: #{tpu_custom_call.1} parent=1 // pred_check_branch
      %922 = sbr.rel (0) target = $region61
    $region60: #{tpu_custom_call.1} parent=1 // pred_region
      %923 = dma.done [#allocation4], 128
    $region61: #{tpu_custom_call.1} parent=1 // pred_fallthru
      _
    %924 = vsyncpa [#allocation3], 1
    %925 = vsyncpa [#allocation6], 1
    %926 = vsyncpa [#allocation9], 1
    %927 = vsyncpa [#allocation12], 1
    %928 = vsyncpa [#allocation4], 1

</llo_original>
